<compile_context>
chip_gen: v7x
topology: tpu7x:2x2x1
jax: 0.10.0
libtpu: 0.0.40
codegen_flags: <defaults>
</compile_context>

<pallas_src>
import functools

import jax
import jax.numpy as jnp
import numpy as np
from jax.experimental import pallas as pl
from jax.experimental.pallas import tpu as pltpu


def _round_up(x, m):
    return ((x + m - 1) // m) * m


def _bottleneck_kernel(x_ref, halo_ref, w1_ref, t1_ref, w2_ref, t2_ref,
                       w3_ref, t3_ref, out_ref, res2_ref, *, seq_len):
    # x_ref block: (1, TL, Cin_p) bf16 ; halo_ref block: (1, 1, 2, Cin_p) bf16
    x = x_ref[0]                                   # (TL, Cin_p) bf16
    tl = x.shape[0]
    row0 = pl.program_id(1) * tl                   # first global L index of this tile

    # ---- conv1 (k=1, BN scale folded into w1) + shift + relu ----
    h = jnp.dot(x, w1_ref[...], preferred_element_type=jnp.float32)
    h = jnp.maximum(h + t1_ref[...], 0.0)          # (TL, Cm_p) f32

    # conv2's pad=1 zero-pads h, not x: force rows at global index >= seq_len to 0
    # (zero x rows through conv1 would otherwise leave relu(t1) ghost rows).
    valid = (jax.lax.broadcasted_iota(jnp.int32, h.shape, 0) + row0) < seq_len
    h = jnp.where(valid, h, 0.0)
    hb = h.astype(jnp.bfloat16)                    # cast once; im2col built in bf16

    # halo rows (x rows just before / after this L-tile) through conv1 (2 rows, cheap),
    # zeroed when they fall outside [0, seq_len) so conv2 sees true zero padding.
    halo = halo_ref[0, 0]                          # (2, Cin_p) bf16
    h_halo = jnp.dot(halo, w1_ref[...], preferred_element_type=jnp.float32)
    h_halo = jnp.maximum(h_halo + t1_ref[...], 0.0)
    prev_row = jnp.where(row0 > 0, h_halo[0:1, :], 0.0).astype(jnp.bfloat16)
    next_row = jnp.where(row0 + tl < seq_len, h_halo[1:2, :], 0.0).astype(jnp.bfloat16)

    # ---- conv2 (k=3, pad=1) as ONE im2col MXU matmul (bf16 operands) ----
    h_prev = jnp.concatenate([prev_row, hb[:tl - 1, :]], axis=0)   # tap @ t-1
    h_next = jnp.concatenate([hb[1:, :], next_row], axis=0)        # tap @ t+1
    im2col = jnp.concatenate([h_prev, hb, h_next], axis=-1)        # (TL, 3*Cm_p) bf16

    y = jnp.dot(im2col, w2_ref[...], preferred_element_type=jnp.float32)
    y = jnp.maximum(y + t2_ref[...], 0.0)          # (TL, Cm_p) f32
    yb = y.astype(jnp.bfloat16)
    res2_ref[0] = yb                               # residual_2, bf16 writeback

    # ---- conv3 (k=1) + shift + relu + residual add ----
    z = jnp.dot(yb, w3_ref[...], preferred_element_type=jnp.float32)
    z = jnp.maximum(z + t3_ref[...], 0.0)
    out_ref[0] = (z + x.astype(jnp.float32)).astype(jnp.bfloat16)  # bf16 store (Cout==Cin)


@functools.partial(jax.jit, static_argnames=("mid_channels", "out_channels", "tile_l"))
def bottleneck_forward(x_ncl, kernel_params, *, mid_channels, out_channels, tile_l=1024):
    """x_ncl: (N, Cin, L) f32 (PyTorch NCL). Returns (out_ncl, residual_2_ncl) in f32."""
    N, Cin, L = x_ncl.shape
    if out_channels != Cin:
        raise ValueError("Bottleneck residual add requires out_channels == in_channels")
    w1p, t1p, w2p, t2p, w3p, t3p = kernel_params
    cin_p, cm_p = w1p.shape
    co_p = w3p.shape[1]

    tl = min(_round_up(L, 8), max(8, _round_up(tile_l, 8)))   # L tile (multiple of 8)
    n_l = pl.cdiv(L, tl)
    lp = n_l * tl

    # NCL -> NLC, pad L/channels (lane-dense 128 multiple), bf16 cast: one wrapper pass.
    x_nlc = jnp.transpose(x_ncl, (0, 2, 1))
    xb = jnp.pad(x_nlc, ((0, 0), (0, lp - L), (0, cin_p - Cin))).astype(jnp.bfloat16)

    # conv2 halo: the x row just before / after each L-tile, via strided slices of xb
    # (no full-array pad/copy).  Out-of-range positions get an explicit zero row; the
    # kernel re-masks the corresponding h row anyway.
    zero_row = jnp.zeros((N, 1, cin_p), jnp.bfloat16)
    if n_l > 1:
        prev_rows = jnp.concatenate([zero_row, xb[:, tl - 1:lp - 1:tl, :]], axis=1)
        next_rows = jnp.concatenate([xb[:, tl:lp:tl, :], zero_row], axis=1)
    else:
        prev_rows = zero_row
        next_rows = zero_row
    halo = jnp.stack([prev_rows, next_rows], axis=2)           # (N, n_l, 2, cin_p)

    kernel = functools.partial(_bottleneck_kernel, seq_len=L)
    row = lambda c: pl.BlockSpec((1, c), lambda n, l: (0, 0))
    out, res2 = pl.pallas_call(
        kernel,
        out_shape=(jax.ShapeDtypeStruct((N, lp, co_p), jnp.bfloat16),
                   jax.ShapeDtypeStruct((N, lp, cm_p), jnp.bfloat16)),
        grid_spec=pltpu.PrefetchScalarGridSpec(
            num_scalar_prefetch=0,
            grid=(N, n_l),
            in_specs=[
                pl.BlockSpec((1, tl, cin_p), lambda n, l: (n, l, 0)),
                pl.BlockSpec((1, 1, 2, cin_p), lambda n, l: (n, l, 0, 0)),
                pl.BlockSpec((cin_p, cm_p), lambda n, l: (0, 0)),
                row(cm_p),
                pl.BlockSpec((3 * cm_p, cm_p), lambda n, l: (0, 0)),
                row(cm_p),
                pl.BlockSpec((cm_p, co_p), lambda n, l: (0, 0)),
                row(co_p),
            ],
            out_specs=[
                pl.BlockSpec((1, tl, co_p), lambda n, l: (n, l, 0)),
                pl.BlockSpec((1, tl, cm_p), lambda n, l: (n, l, 0)),
            ],
        ),
        compiler_params=pltpu.CompilerParams(
            dimension_semantics=("parallel", "parallel")),
    )(xb, halo, w1p, t1p, w2p, t2p, w3p, t3p)

    # Test interface: slice away padding, back to NCL f32 (fused slice+cast+transpose).
    out_ncl = jnp.transpose(out[:, :L, :out_channels].astype(jnp.float32), (0, 2, 1))
    res2_ncl = jnp.transpose(res2[:, :L, :mid_channels].astype(jnp.float32), (0, 2, 1))
    return out_ncl, res2_ncl


def make_torch_params(key, in_channels, mid_channels, out_channels):
    """Deterministic synthetic conv weights/biases + BN stats (PyTorch layouts)."""
    ks = jax.random.split(key, 9)
    f32 = jnp.float32
    w1_t = jax.random.normal(ks[0], (mid_channels, in_channels, 1), f32) * 0.2
    b1 = jax.random.normal(ks[1], (mid_channels,), f32) * 0.1
    w2_t = jax.random.normal(ks[2], (mid_channels, mid_channels, 3), f32) * 0.2
    b2 = jax.random.normal(ks[3], (mid_channels,), f32) * 0.1
    w3_t = jax.random.normal(ks[4], (out_channels, mid_channels, 1), f32) * 0.2
    b3 = jax.random.normal(ks[5], (out_channels,), f32) * 0.1

    def bn(k, c):
        kk = jax.random.split(k, 4)
        gamma = 1.0 + 0.1 * jax.random.normal(kk[0], (c,), f32)
        beta = 0.1 * jax.random.normal(kk[1], (c,), f32)
        mean = 0.1 * jax.random.normal(kk[2], (c,), f32)
        var = jax.random.uniform(kk[3], (c,), f32, 0.5, 1.5)
        return gamma, beta, mean, var

    return (w1_t, b1, w2_t, b2, w3_t, b3,
            bn(ks[6], mid_channels), bn(ks[7], mid_channels), bn(ks[8], out_channels))


def fold_and_pack(torch_style, eps=1e-5):
    """Fold conv bias + BatchNorm (eval) into per-channel scale/shift, fold the scale
    into the weight columns, reshape convs to matmul layout, zero-pad channels to 128
    multiples (lane-dense) and cast matmul weights to bf16."""
    (w1_t, b1, w2_t, b2, w3_t, b3, bn1, bn2, bn3) = torch_style
    cmid, cin, _ = w1_t.shape
    cout = w3_t.shape[0]
    cin_p, cm_p, co_p = (_round_up(c, 128) for c in (cin, cmid, cout))

    def fold(bias, bnp):
        g, be, m, v = bnp
        s = g / jnp.sqrt(v + eps)
        return s, be + s * (bias - m)

    s1, t1 = fold(b1, bn1)
    s2, t2 = fold(b2, bn2)
    s3, t3 = fold(b3, bn3)

    def pad2(w, r, c):
        return jnp.pad(w, ((0, r - w.shape[0]), (0, c - w.shape[1])))

    w1 = pad2(w1_t[:, :, 0].T * s1[None, :], cin_p, cm_p).astype(jnp.bfloat16)
    # conv2: tap k multiplies the k-shifted input (prev, center, next);
    # stack the (padded) taps along K so the kernel does one (TL, 3*Cm) @ (3*Cm, Cm) dot.
    w2 = jnp.concatenate(
        [pad2(w2_t[:, :, k].T * s2[None, :], cm_p, cm_p) for k in range(3)],
        axis=0).astype(jnp.bfloat16)
    w3 = pad2(w3_t[:, :, 0].T * s3[None, :], cm_p, co_p).astype(jnp.bfloat16)

    t1p = jnp.pad(t1, (0, cm_p - cmid))[None, :].astype(jnp.float32)
    t2p = jnp.pad(t2, (0, cm_p - cmid))[None, :].astype(jnp.float32)
    t3p = jnp.pad(t3, (0, co_p - cout))[None, :].astype(jnp.float32)
    return (w1, t1p, w2, t2p, w3, t3p)


def reference_forward(x_ncl, torch_style, eps=1e-5):
    """Pure-JAX f32 reference mirroring the PyTorch forward (eval mode)."""
    (w1_t, b1, w2_t, b2, w3_t, b3, bn1, bn2, bn3) = torch_style

    def bn_apply(h, bnp):  # h: (N, C, L)
        g, be, m, v = bnp
        return (h - m[None, :, None]) / jnp.sqrt(v[None, :, None] + eps) \
            * g[None, :, None] + be[None, :, None]

    def conv1d(h, w, b, pad):  # h: (N, Cin, L), w: (Cout, Cin, K)
        dn = jax.lax.conv_dimension_numbers(h.shape, w.shape, ("NCH", "OIH", "NCH"))
        out = jax.lax.conv_general_dilated(h, w, (1,), [(pad, pad)], dimension_numbers=dn)
        return out + b[None, :, None]

    residual_input = x_ncl
    h = jnp.maximum(bn_apply(conv1d(x_ncl, w1_t, b1, 0), bn1), 0.0)
    h = jnp.maximum(bn_apply(conv1d(h, w2_t, b2, 1), bn2), 0.0)
    residual_2 = h
    h = jnp.maximum(bn_apply(conv1d(h, w3_t, b3, 0), bn3), 0.0)
    return h + residual_input, residual_2


def _run_case(key, N, Cin, Cmid, Cout, L, tile_l, force_positive_shift=False):
    kx, kp = jax.random.split(key)
    x = jax.random.normal(kx, (N, Cin, L), jnp.float32)
    torch_style = make_torch_params(kp, Cin, Cmid, Cout)
    if force_positive_shift:
        # Force bn1's beta strictly positive so folded shift t1 > 0: this is the case
        # where wrongly padding x (instead of h) at sequence boundaries would show up.
        (w1_t, b1, w2_t, b2, w3_t, b3, bn1, bn2, bn3) = torch_style
        g1, be1, m1, v1 = bn1
        torch_style = (w1_t, b1, w2_t, b2, w3_t, b3,
                       (g1, jnp.abs(be1) + 0.25, m1, v1), bn2, bn3)

    kparams = fold_and_pack(torch_style)
    out, res2 = bottleneck_forward(x, kparams, mid_channels=Cmid,
                                   out_channels=Cout, tile_l=tile_l)
    out, res2 = jax.block_until_ready(out), jax.block_until_ready(res2)

    out_ref, res2_ref = reference_forward(x, torch_style)
    # Precision contract: all matmul operands + both writebacks are bf16 -> relaxed
    # tolerance vs the f32 reference.
    np.testing.assert_allclose(np.asarray(out), np.asarray(out_ref), rtol=5e-2, atol=5e-2)
    np.testing.assert_allclose(np.asarray(res2), np.asarray(res2_ref), rtol=5e-2, atol=5e-2)


if __name__ == "__main__":
    key = jax.random.PRNGKey(0)
    k1, k2 = jax.random.split(key)

    # Case 1: small, single L-tile (out_channels == in_channels for the residual add).
    _run_case(k1, N=2, Cin=4, Cmid=8, Cout=4, L=16, tile_l=1024)

    # Case 2: multiple L-tiles, L not a multiple of the tile, BN shift forced positive
    # (exercises the conv2 zero-padding / halo-mask correctness fixes).
    _run_case(k2, N=2, Cin=4, Cmid=8, Cout=4, L=40, tile_l=16,
              force_positive_shift=True)

    print("KERNEL_OK")
</pallas_src>

<mosaic_0001>
module attributes {stable_mosaic.version = 11 : i64} {
  func.func @_bottleneck_kernel(%arg0: i32, %arg1: i32, %arg2: memref<1x16x128xbf16, #tpu.memory_space<vmem>>, %arg3: memref<1x1x2x128xbf16, #tpu.memory_space<vmem>>, %arg4: memref<128x128xbf16, #tpu.memory_space<vmem>>, %arg5: memref<1x128xf32, #tpu.memory_space<vmem>>, %arg6: memref<384x128xbf16, #tpu.memory_space<vmem>>, %arg7: memref<1x128xf32, #tpu.memory_space<vmem>>, %arg8: memref<128x128xbf16, #tpu.memory_space<vmem>>, %arg9: memref<1x128xf32, #tpu.memory_space<vmem>>, %arg10: memref<1x16x128xbf16, #tpu.memory_space<vmem>>, %arg11: memref<1x16x128xbf16, #tpu.memory_space<vmem>>) attributes {dimension_semantics = [#tpu.dimension_semantics<parallel>, #tpu.dimension_semantics<parallel>], iteration_bounds = array<i64: 2, 1>, scalar_prefetch = 0 : i64, scratch_operands = 0 : i64, tpu.core_type = #tpu.core_type<tc>, window_params = [{transform_indices = @transform_0, window_bounds = array<i64: 1, 16, 128>}, {transform_indices = @transform_1, window_bounds = array<i64: 1, 1, 2, 128>}, {pipeline_mode = #tpu.pipeline_mode<synchronous>, transform_indices = @transform_2, window_bounds = array<i64: 128, 128>}, {pipeline_mode = #tpu.pipeline_mode<synchronous>, transform_indices = @transform_3, window_bounds = array<i64: 1, 128>}, {pipeline_mode = #tpu.pipeline_mode<synchronous>, transform_indices = @transform_4, window_bounds = array<i64: 384, 128>}, {pipeline_mode = #tpu.pipeline_mode<synchronous>, transform_indices = @transform_5, window_bounds = array<i64: 1, 128>}, {pipeline_mode = #tpu.pipeline_mode<synchronous>, transform_indices = @transform_6, window_bounds = array<i64: 128, 128>}, {pipeline_mode = #tpu.pipeline_mode<synchronous>, transform_indices = @transform_7, window_bounds = array<i64: 1, 128>}, {transform_indices = @transform_8, window_bounds = array<i64: 1, 16, 128>}, {transform_indices = @transform_9, window_bounds = array<i64: 1, 16, 128>}]} {
    %c0 = arith.constant 0 : index
    %c0_0 = arith.constant 0 : index
    %c0_1 = arith.constant 0 : index
    %0 = vector.load %arg2[%c0, %c0_0, %c0_1] : memref<1x16x128xbf16, #tpu.memory_space<vmem>>, vector<1x16x128xbf16>
    %1 = vector.shape_cast %0 : vector<1x16x128xbf16> to vector<16x128xbf16>
    %c16_i32 = arith.constant 16 : i32
    %2 = arith.muli %arg1, %c16_i32 : i32
    %c0_2 = arith.constant 0 : index
    %c0_3 = arith.constant 0 : index
    %3 = vector.load %arg4[%c0_2, %c0_3] : memref<128x128xbf16, #tpu.memory_space<vmem>>, vector<128x128xbf16>
    %cst = arith.constant dense<0.000000e+00> : vector<16x128xf32>
    %4 = tpu.matmul %1, %3, %cst {dimension_numbers = #tpu.dot_dimension_numbers<[1], [0], [0], [1], [0, 0, 1, 1], [], []>} : vector<16x128xbf16>, vector<128x128xbf16>, vector<16x128xf32> -> vector<16x128xf32>
    %c0_4 = arith.constant 0 : index
    %c0_5 = arith.constant 0 : index
    %5 = vector.load %arg5[%c0_4, %c0_5] : memref<1x128xf32, #tpu.memory_space<vmem>>, vector<1x128xf32>
    %6 = vector.broadcast %5 : vector<1x128xf32> to vector<16x128xf32>
    %7 = arith.addf %4, %6 : vector<16x128xf32>
    %cst_6 = arith.constant 0.000000e+00 : f32
    %8 = vector.broadcast %cst_6 : f32 to vector<16x128xf32>
    %9 = arith.maximumf %7, %8 : vector<16x128xf32>
    %10 = tpu.iota {dimensions = array<i32: 0>} : vector<16x128xi32>
    %11 = vector.broadcast %2 : i32 to vector<16x128xi32>
    %12 = arith.addi %10, %11 : vector<16x128xi32>
    %c16_i32_7 = arith.constant 16 : i32
    %13 = vector.broadcast %c16_i32_7 : i32 to vector<16x128xi32>
    %14 = arith.cmpi slt, %12, %13 : vector<16x128xi32>
    %cst_8 = arith.constant 0.000000e+00 : f32
    %15 = vector.broadcast %cst_8 : f32 to vector<16x128xf32>
    %16 = arith.select %14, %9, %15 : vector<16x128xi1>, vector<16x128xf32>
    %17 = arith.truncf %16 : vector<16x128xf32> to vector<16x128xbf16>
    %c0_9 = arith.constant 0 : index
    %c0_10 = arith.constant 0 : index
    %c0_11 = arith.constant 0 : index
    %c0_12 = arith.constant 0 : index
    %18 = vector.load %arg3[%c0_9, %c0_10, %c0_11, %c0_12] : memref<1x1x2x128xbf16, #tpu.memory_space<vmem>>, vector<1x1x2x128xbf16>
    %19 = vector.shape_cast %18 : vector<1x1x2x128xbf16> to vector<2x128xbf16>
    %c0_13 = arith.constant 0 : index
    %c0_14 = arith.constant 0 : index
    %20 = vector.load %arg4[%c0_13, %c0_14] : memref<128x128xbf16, #tpu.memory_space<vmem>>, vector<128x128xbf16>
    %cst_15 = arith.constant dense<0.000000e+00> : vector<2x128xf32>
    %21 = tpu.matmul %19, %20, %cst_15 {dimension_numbers = #tpu.dot_dimension_numbers<[1], [0], [0], [1], [0, 0, 1, 1], [], []>} : vector<2x128xbf16>, vector<128x128xbf16>, vector<2x128xf32> -> vector<2x128xf32>
    %c0_16 = arith.constant 0 : index
    %c0_17 = arith.constant 0 : index
    %22 = vector.load %arg5[%c0_16, %c0_17] : memref<1x128xf32, #tpu.memory_space<vmem>>, vector<1x128xf32>
    %23 = vector.broadcast %22 : vector<1x128xf32> to vector<2x128xf32>
    %24 = arith.addf %21, %23 : vector<2x128xf32>
    %cst_18 = arith.constant 0.000000e+00 : f32
    %25 = vector.broadcast %cst_18 : f32 to vector<2x128xf32>
    %26 = arith.maximumf %24, %25 : vector<2x128xf32>
    %c0_i32 = arith.constant 0 : i32
    %27 = arith.cmpi sgt, %2, %c0_i32 : i32
    %28 = vector.extract_strided_slice %26 {offsets = [0, 0], sizes = [1, 128], strides = [1, 1]} : vector<2x128xf32> to vector<1x128xf32>
    %cst_19 = arith.constant 0.000000e+00 : f32
    %29 = vector.broadcast %cst_19 : f32 to vector<1x128xf32>
    %30 = arith.select %27, %28, %29 : vector<1x128xf32>
    %31 = arith.truncf %30 : vector<1x128xf32> to vector<1x128xbf16>
    %c16_i32_20 = arith.constant 16 : i32
    %32 = arith.addi %2, %c16_i32_20 : i32
    %c16_i32_21 = arith.constant 16 : i32
    %33 = arith.cmpi slt, %32, %c16_i32_21 : i32
    %34 = vector.extract_strided_slice %26 {offsets = [1, 0], sizes = [1, 128], strides = [1, 1]} : vector<2x128xf32> to vector<1x128xf32>
    %cst_22 = arith.constant 0.000000e+00 : f32
    %35 = vector.broadcast %cst_22 : f32 to vector<1x128xf32>
    %36 = arith.select %33, %34, %35 : vector<1x128xf32>
    %37 = arith.truncf %36 : vector<1x128xf32> to vector<1x128xbf16>
    %38 = vector.extract_strided_slice %17 {offsets = [0, 0], sizes = [15, 128], strides = [1, 1]} : vector<16x128xbf16> to vector<15x128xbf16>
    %39 = tpu.concatenate %31, %38 in 0 : vector<1x128xbf16>, vector<15x128xbf16> -> vector<16x128xbf16>
    %40 = vector.extract_strided_slice %17 {offsets = [1, 0], sizes = [15, 128], strides = [1, 1]} : vector<16x128xbf16> to vector<15x128xbf16>
    %41 = tpu.concatenate %40, %37 in 0 : vector<15x128xbf16>, vector<1x128xbf16> -> vector<16x128xbf16>
    %42 = tpu.concatenate %39, %17, %41 in 1 : vector<16x128xbf16>, vector<16x128xbf16>, vector<16x128xbf16> -> vector<16x384xbf16>
    %c0_23 = arith.constant 0 : index
    %c0_24 = arith.constant 0 : index
    %43 = vector.load %arg6[%c0_23, %c0_24] : memref<384x128xbf16, #tpu.memory_space<vmem>>, vector<384x128xbf16>
    %cst_25 = arith.constant dense<0.000000e+00> : vector<16x128xf32>
    %44 = tpu.matmul %42, %43, %cst_25 {dimension_numbers = #tpu.dot_dimension_numbers<[1], [0], [0], [1], [0, 0, 1, 1], [], []>} : vector<16x384xbf16>, vector<384x128xbf16>, vector<16x128xf32> -> vector<16x128xf32>
    %c0_26 = arith.constant 0 : index
    %c0_27 = arith.constant 0 : index
    %45 = vector.load %arg7[%c0_26, %c0_27] : memref<1x128xf32, #tpu.memory_space<vmem>>, vector<1x128xf32>
    %46 = vector.broadcast %45 : vector<1x128xf32> to vector<16x128xf32>
    %47 = arith.addf %44, %46 : vector<16x128xf32>
    %cst_28 = arith.constant 0.000000e+00 : f32
    %48 = vector.broadcast %cst_28 : f32 to vector<16x128xf32>
    %49 = arith.maximumf %47, %48 : vector<16x128xf32>
    %50 = arith.truncf %49 : vector<16x128xf32> to vector<16x128xbf16>
    %c0_29 = arith.constant 0 : index
    %c0_30 = arith.constant 0 : index
    %c0_31 = arith.constant 0 : index
    %51 = vector.load %arg11[%c0_29, %c0_30, %c0_31] : memref<1x16x128xbf16, #tpu.memory_space<vmem>>, vector<1x16x128xbf16>
    %52 = vector.shape_cast %51 : vector<1x16x128xbf16> to vector<16x128xbf16>
    %53 = vector.shape_cast %50 : vector<16x128xbf16> to vector<1x16x128xbf16>
    tpu.vector_store %arg11[%c0_29, %c0_30, %c0_31], %53 {strides = array<i32>} : memref<1x16x128xbf16, #tpu.memory_space<vmem>>, vector<1x16x128xbf16>,
    %c0_32 = arith.constant 0 : index
    %c0_33 = arith.constant 0 : index
    %54 = vector.load %arg8[%c0_32, %c0_33] : memref<128x128xbf16, #tpu.memory_space<vmem>>, vector<128x128xbf16>
    %cst_34 = arith.constant dense<0.000000e+00> : vector<16x128xf32>
    %55 = tpu.matmul %50, %54, %cst_34 {dimension_numbers = #tpu.dot_dimension_numbers<[1], [0], [0], [1], [0, 0, 1, 1], [], []>} : vector<16x128xbf16>, vector<128x128xbf16>, vector<16x128xf32> -> vector<16x128xf32>
    %c0_35 = arith.constant 0 : index
    %c0_36 = arith.constant 0 : index
    %56 = vector.load %arg9[%c0_35, %c0_36] : memref<1x128xf32, #tpu.memory_space<vmem>>, vector<1x128xf32>
    %57 = vector.broadcast %56 : vector<1x128xf32> to vector<16x128xf32>
    %58 = arith.addf %55, %57 : vector<16x128xf32>
    %cst_37 = arith.constant 0.000000e+00 : f32
    %59 = vector.broadcast %cst_37 : f32 to vector<16x128xf32>
    %60 = arith.maximumf %58, %59 : vector<16x128xf32>
    %61 = arith.extf %1 : vector<16x128xbf16> to vector<16x128xf32>
    %62 = arith.addf %60, %61 : vector<16x128xf32>
    %63 = arith.truncf %62 : vector<16x128xf32> to vector<16x128xbf16>
    %c0_38 = arith.constant 0 : index
    %c0_39 = arith.constant 0 : index
    %c0_40 = arith.constant 0 : index
    %64 = vector.load %arg10[%c0_38, %c0_39, %c0_40] : memref<1x16x128xbf16, #tpu.memory_space<vmem>>, vector<1x16x128xbf16>
    %65 = vector.shape_cast %64 : vector<1x16x128xbf16> to vector<16x128xbf16>
    %66 = vector.shape_cast %63 : vector<16x128xbf16> to vector<1x16x128xbf16>
    tpu.vector_store %arg10[%c0_38, %c0_39, %c0_40], %66 {strides = array<i32>} : memref<1x16x128xbf16, #tpu.memory_space<vmem>>, vector<1x16x128xbf16>,
    return
  }
  func.func @transform_0(%arg0: i32, %arg1: i32) -> (i32, i32, i32) {
    %c0_i32 = arith.constant 0 : i32
    %c0_i32_0 = arith.constant 0 : i32
    return %arg0, %arg1, %c0_i32 : i32, i32, i32
  }
  func.func @transform_1(%arg0: i32, %arg1: i32) -> (i32, i32, i32, i32) {
    %c0_i32 = arith.constant 0 : i32
    %c0_i32_0 = arith.constant 0 : i32
    %c0_i32_1 = arith.constant 0 : i32
    return %arg0, %arg1, %c0_i32, %c0_i32_0 : i32, i32, i32, i32
  }
  func.func @transform_2(%arg0: i32, %arg1: i32) -> (i32, i32) {
    %c0_i32 = arith.constant 0 : i32
    %c0_i32_0 = arith.constant 0 : i32
    %c0_i32_1 = arith.constant 0 : i32
    return %c0_i32, %c0_i32_0 : i32, i32
  }
  func.func @transform_3(%arg0: i32, %arg1: i32) -> (i32, i32) {
    %c0_i32 = arith.constant 0 : i32
    %c0_i32_0 = arith.constant 0 : i32
    %c0_i32_1 = arith.constant 0 : i32
    return %c0_i32, %c0_i32_0 : i32, i32
  }
  func.func @transform_4(%arg0: i32, %arg1: i32) -> (i32, i32) {
    %c0_i32 = arith.constant 0 : i32
    %c0_i32_0 = arith.constant 0 : i32
    %c0_i32_1 = arith.constant 0 : i32
    return %c0_i32, %c0_i32_0 : i32, i32
  }
  func.func @transform_5(%arg0: i32, %arg1: i32) -> (i32, i32) {
    %c0_i32 = arith.constant 0 : i32
    %c0_i32_0 = arith.constant 0 : i32
    %c0_i32_1 = arith.constant 0 : i32
    return %c0_i32, %c0_i32_0 : i32, i32
  }
  func.func @transform_6(%arg0: i32, %arg1: i32) -> (i32, i32) {
    %c0_i32 = arith.constant 0 : i32
    %c0_i32_0 = arith.constant 0 : i32
    %c0_i32_1 = arith.constant 0 : i32
    return %c0_i32, %c0_i32_0 : i32, i32
  }
  func.func @transform_7(%arg0: i32, %arg1: i32) -> (i32, i32) {
    %c0_i32 = arith.constant 0 : i32
    %c0_i32_0 = arith.constant 0 : i32
    %c0_i32_1 = arith.constant 0 : i32
    return %c0_i32, %c0_i32_0 : i32, i32
  }
  func.func @transform_8(%arg0: i32, %arg1: i32) -> (i32, i32, i32) {
    %c0_i32 = arith.constant 0 : i32
    %c0_i32_0 = arith.constant 0 : i32
    return %arg0, %arg1, %c0_i32 : i32, i32, i32
  }
  func.func @transform_9(%arg0: i32, %arg1: i32) -> (i32, i32, i32) {
    %c0_i32 = arith.constant 0 : i32
    %c0_i32_0 = arith.constant 0 : i32
    return %arg0, %arg1, %c0_i32 : i32, i32, i32
  }
}

</mosaic_0001>

<llo_original>
// kernel: bottleneck_forward.1
$region0: #{bottleneck_forward.1}
  #allocation0 [shape = 'u32[]', space=smem, size = 0x4, offset = 0x4, fixed_abs, tag = 'smem constant byte address 0x4 - core index']
  #allocation1 [shape = 'u32[144,128]{1,0:T(1,128)}', space=vmem, size = 0x12000, scoped, tag = 'internal scratch']
  %s0 = inlined_call_operand.vmem [shape: bf16[2,16,128], index: 0, kind: input, shape index: {}]
  %s1 = inlined_call_operand.vmem [shape: bf16[2,1,2,128], index: 1, kind: input, shape index: {}]
  %s2 = inlined_call_operand.vmem [shape: bf16[128,128], index: 2, kind: input, shape index: {}]
  %s3 = inlined_call_operand.vmem [shape: f32[1,128], index: 3, kind: input, shape index: {}]
  %s4 = inlined_call_operand.hbm [shape: bf16[384,128], index: 4, kind: input, shape index: {}]
  %s5 = inlined_call_operand.vmem [shape: f32[1,128], index: 5, kind: input, shape index: {}]
  %s6 = inlined_call_operand.hbm [shape: bf16[128,128], index: 6, kind: input, shape index: {}]
  %s7 = inlined_call_operand.vmem [shape: f32[1,128], index: 7, kind: input, shape index: {}]
  %s8 = inlined_call_operand.vmem [shape: bf16[2,16,128], index: 8, kind: output, shape index: {0}]
  %s9 = inlined_call_operand.vmem [shape: bf16[2,16,128], index: 9, kind: output, shape index: {1}]
  %10 = xla_tuple %s8, %s9
  %s11 = sld [smem:[#allocation0]]
  $region81: #{bottleneck_forward.1} parent=0
    _
  %s13 = ssub.s32 1, %s11
  %s14 = scalar_select 0, %s13, %s11
  $region1: #{bottleneck_forward.1} parent=0
    #allocation2 [shape = 'u8[98304]{0}', space=vmem, size = 0x18000, scoped, tag = 'input window, operand 4, single buffered']
    #allocation3 [shape = 's32[2]{0}', space=sflag, size = 0x8, scoped, tag = 'scoped memory for bottleneck_forward.1']
    #allocation4 [shape = 'u8[32768]{0}', space=vmem, size = 0x8000, scoped, tag = 'input window, operand 6, single buffered']
    #allocation5 [shape = 's32[1]{0}', space=sflag, size = 0x4, scoped, tag = 'scoped memory for bottleneck_forward.1']
    %15 = vsyncpa [#allocation3], 0
    %16 = vsyncpa [#allocation5], 0
    loop: start=0, step=1, limit=4
    $region2: #{bottleneck_forward.1} parent=1 // loop_pre_header
      _
    $region3: #{bottleneck_forward.1} parent=1 // loop_header
      %s18 = sphi 0, %s22
      %p19 = scmp.ge.s32.totalorder %s18, 4
      %s25 = sphi 0, %s37
      %s26 = sphi 0, %s33
      %s27 = sphi 0, %s25
      %s28 = sphi 0, %s26
      %s29 = sphi 0, %s27
      %s30 = sphi 0, %s28
      %s42 = sphi 0, %s44
      %s45 = sphi 0, %s42
      %s46 = sphi 0, %s45
      %s62 = sphi 0, %s46
      %s70 = sphi 0, %s72
      %s73 = sphi 0, %s70
      %s74 = sphi 0, %s73
      %s90 = sphi 0, %s74
      %s94 = sphi 0, %s94
      %s96 = sphi 0, %s94
      %s97 = sphi 0, %s96
      %s111 = sphi 0, %s97
      %s115 = sphi 0, %s115
      %s117 = sphi 0, %s115
      %s118 = sphi 0, %s117
      %s132 = sphi 0, %s118
      %s136 = sphi 0, %s136
      %s138 = sphi 0, %s136
      %s139 = sphi 0, %s138
      %s153 = sphi 0, %s139
      %s157 = sphi 0, %s157
      %s159 = sphi 0, %s157
      %s160 = sphi 0, %s159
      %s174 = sphi 0, %s160
      %s178 = sphi 0, %s178
      %s180 = sphi 0, %s178
      %s181 = sphi 0, %s180
      %s195 = sphi 0, %s181
      %s199 = sphi 0, %s199
      %s201 = sphi 0, %s199
      %s202 = sphi 0, %s201
      %s216 = sphi 0, %s202
      %s224 = sphi 0, %s226
      %s227 = sphi 0, %s224
      %s228 = sphi 0, %s227
      %s244 = sphi 0, %s228
      %s252 = sphi 0, %s254
      %s255 = sphi 0, %s252
      %s256 = sphi 0, %s255
      %s272 = sphi 0, %s256
    $region4: #{bottleneck_forward.1} parent=1 // loop_header_branch
      %21 = sbr.rel (%p19) target = $region8
    $region5: #{bottleneck_forward.1} parent=1 // loop_body
      %s23 = ssub.s32 %s18, 1
      %s24 = ssub.s32 %s18, 2
      %s31 = sadd.s32 1, %s26
      %p32 = scmp.ge.s32.totalorder %s31, 1
      %s33 = scalar_select %p32, 0, %s31
      %s34 = sadd.s32 1, %s25
      %s35 = scalar_select %p32, %s34, %s25
      %p36 = scmp.ge.s32.totalorder %s35, 2
      %s37 = scalar_select %p36, 0, %s35
      %s38 = ssub.s32 %s25, %s37
      %s39 = ssub.s32 %s26, %s33
      %s40 = sor.u32 %s38, %s39
      %p41 = scmp.eq.s32.totalorder %s40, 0
      %s43 = sadd.s32 %s42, 1
      %s44 = scalar_select %p41, %s42, %s43
      %p47 = pneg %p41
      %p48 = scmp.eq.s32.totalorder %s18, 1
      %p49 = por %p47, %p48
      %p50 = scmp.ne.s32.totalorder %s42, %s45
      %p51 = scmp.eq.s32.totalorder %s18, 0
      %p52 = por %p50, %p51
      %p53 = scmp.ne.s32.totalorder %s42, %s45
      %p54 = scmp.eq.s32.totalorder %s23, 1
      %p55 = por %p53, %p54
      %p56 = scmp.ne.s32.totalorder %s45, %s46
      %p57 = scmp.eq.s32.totalorder %s23, 0
      %p58 = por %p56, %p57
      %p59 = scmp.ne.s32.totalorder %s45, %s46
      %p60 = scmp.eq.s32.totalorder %s24, 1
      %p61 = por %p59, %p60
      %p63 = scmp.ne.s32.totalorder %s46, %s62
      %p64 = scmp.eq.s32.totalorder %s24, 0
      %p65 = por %p63, %p64
      %s66 = ssub.s32 %s25, %s37
      %s67 = ssub.s32 %s26, %s33
      %s68 = sor.u32 %s66, %s67
      %p69 = scmp.eq.s32.totalorder %s68, 0
      %s71 = sadd.s32 %s70, 1
      %s72 = scalar_select %p69, %s70, %s71
      %p75 = pneg %p69
      %p76 = scmp.eq.s32.totalorder %s18, 1
      %p77 = por %p75, %p76
      %p78 = scmp.ne.s32.totalorder %s70, %s73
      %p79 = scmp.eq.s32.totalorder %s18, 0
      %p80 = por %p78, %p79
      %p81 = scmp.ne.s32.totalorder %s70, %s73
      %p82 = scmp.eq.s32.totalorder %s23, 1
      %p83 = por %p81, %p82
      %p84 = scmp.ne.s32.totalorder %s73, %s74
      %p85 = scmp.eq.s32.totalorder %s23, 0
      %p86 = por %p84, %p85
      %p87 = scmp.ne.s32.totalorder %s73, %s74
      %p88 = scmp.eq.s32.totalorder %s24, 1
      %p89 = por %p87, %p88
      %p91 = scmp.ne.s32.totalorder %s74, %s90
      %p92 = scmp.eq.s32.totalorder %s24, 0
      %p93 = por %p91, %p92
      %s95 = sadd.s32 %s94, 1
      %p98 = scmp.eq.s32.totalorder %s18, 1
      %p99 = scmp.ne.s32.totalorder %s94, %s96
      %p100 = scmp.eq.s32.totalorder %s18, 0
      %p101 = por %p99, %p100
      %p102 = scmp.ne.s32.totalorder %s94, %s96
      %p103 = scmp.eq.s32.totalorder %s23, 1
      %p104 = por %p102, %p103
      %p105 = scmp.ne.s32.totalorder %s96, %s97
      %p106 = scmp.eq.s32.totalorder %s23, 0
      %p107 = por %p105, %p106
      %p108 = scmp.ne.s32.totalorder %s96, %s97
      %p109 = scmp.eq.s32.totalorder %s24, 1
      %p110 = por %p108, %p109
      %p112 = scmp.ne.s32.totalorder %s97, %s111
      %p113 = scmp.eq.s32.totalorder %s24, 0
      %p114 = por %p112, %p113
      %s116 = sadd.s32 %s115, 1
      %p119 = scmp.eq.s32.totalorder %s18, 1
      %p120 = scmp.ne.s32.totalorder %s115, %s117
      %p121 = scmp.eq.s32.totalorder %s18, 0
      %p122 = por %p120, %p121
      %p123 = scmp.ne.s32.totalorder %s115, %s117
      %p124 = scmp.eq.s32.totalorder %s23, 1
      %p125 = por %p123, %p124
      %p126 = scmp.ne.s32.totalorder %s117, %s118
      %p127 = scmp.eq.s32.totalorder %s23, 0
      %p128 = por %p126, %p127
      %p129 = scmp.ne.s32.totalorder %s117, %s118
      %p130 = scmp.eq.s32.totalorder %s24, 1
      %p131 = por %p129, %p130
      %p133 = scmp.ne.s32.totalorder %s118, %s132
      %p134 = scmp.eq.s32.totalorder %s24, 0
      %p135 = por %p133, %p134
      %s137 = sadd.s32 %s136, 1
      %p140 = scmp.eq.s32.totalorder %s18, 1
      %p141 = scmp.ne.s32.totalorder %s136, %s138
      %p142 = scmp.eq.s32.totalorder %s18, 0
      %p143 = por %p141, %p142
      %p144 = scmp.ne.s32.totalorder %s136, %s138
      %p145 = scmp.eq.s32.totalorder %s23, 1
      %p146 = por %p144, %p145
      %p147 = scmp.ne.s32.totalorder %s138, %s139
      %p148 = scmp.eq.s32.totalorder %s23, 0
      %p149 = por %p147, %p148
      %p150 = scmp.ne.s32.totalorder %s138, %s139
      %p151 = scmp.eq.s32.totalorder %s24, 1
      %p152 = por %p150, %p151
      %p154 = scmp.ne.s32.totalorder %s139, %s153
      %p155 = scmp.eq.s32.totalorder %s24, 0
      %p156 = por %p154, %p155
      %s158 = sadd.s32 %s157, 1
      %p161 = scmp.eq.s32.totalorder %s18, 1
      %p162 = scmp.ne.s32.totalorder %s157, %s159
      %p163 = scmp.eq.s32.totalorder %s18, 0
      %p164 = por %p162, %p163
      %p165 = scmp.ne.s32.totalorder %s157, %s159
      %p166 = scmp.eq.s32.totalorder %s23, 1
      %p167 = por %p165, %p166
      %p168 = scmp.ne.s32.totalorder %s159, %s160
      %p169 = scmp.eq.s32.totalorder %s23, 0
      %p170 = por %p168, %p169
      %p171 = scmp.ne.s32.totalorder %s159, %s160
      %p172 = scmp.eq.s32.totalorder %s24, 1
      %p173 = por %p171, %p172
      %p175 = scmp.ne.s32.totalorder %s160, %s174
      %p176 = scmp.eq.s32.totalorder %s24, 0
      %p177 = por %p175, %p176
      %s179 = sadd.s32 %s178, 1
      %p182 = scmp.eq.s32.totalorder %s18, 1
      %p183 = scmp.ne.s32.totalorder %s178, %s180
      %p184 = scmp.eq.s32.totalorder %s18, 0
      %p185 = por %p183, %p184
      %p186 = scmp.ne.s32.totalorder %s178, %s180
      %p187 = scmp.eq.s32.totalorder %s23, 1
      %p188 = por %p186, %p187
      %p189 = scmp.ne.s32.totalorder %s180, %s181
      %p190 = scmp.eq.s32.totalorder %s23, 0
      %p191 = por %p189, %p190
      %p192 = scmp.ne.s32.totalorder %s180, %s181
      %p193 = scmp.eq.s32.totalorder %s24, 1
      %p194 = por %p192, %p193
      %p196 = scmp.ne.s32.totalorder %s181, %s195
      %p197 = scmp.eq.s32.totalorder %s24, 0
      %p198 = por %p196, %p197
      %s200 = sadd.s32 %s199, 1
      %p203 = scmp.eq.s32.totalorder %s18, 1
      %p204 = scmp.ne.s32.totalorder %s199, %s201
      %p205 = scmp.eq.s32.totalorder %s18, 0
      %p206 = por %p204, %p205
      %p207 = scmp.ne.s32.totalorder %s199, %s201
      %p208 = scmp.eq.s32.totalorder %s23, 1
      %p209 = por %p207, %p208
      %p210 = scmp.ne.s32.totalorder %s201, %s202
      %p211 = scmp.eq.s32.totalorder %s23, 0
      %p212 = por %p210, %p211
      %p213 = scmp.ne.s32.totalorder %s201, %s202
      %p214 = scmp.eq.s32.totalorder %s24, 1
      %p215 = por %p213, %p214
      %p217 = scmp.ne.s32.totalorder %s202, %s216
      %p218 = scmp.eq.s32.totalorder %s24, 0
      %p219 = por %p217, %p218
      %s220 = ssub.s32 %s25, %s37
      %s221 = ssub.s32 %s26, %s33
      %s222 = sor.u32 %s220, %s221
      %p223 = scmp.eq.s32.totalorder %s222, 0
      %s225 = sadd.s32 %s224, 1
      %s226 = scalar_select %p223, %s224, %s225
      %p229 = pneg %p223
      %p230 = scmp.eq.s32.totalorder %s18, 1
      %p231 = por %p229, %p230
      %p232 = scmp.ne.s32.totalorder %s224, %s227
      %p233 = scmp.eq.s32.totalorder %s18, 0
      %p234 = por %p232, %p233
      %p235 = scmp.ne.s32.totalorder %s224, %s227
      %p236 = scmp.eq.s32.totalorder %s23, 1
      %p237 = por %p235, %p236
      %p238 = scmp.ne.s32.totalorder %s227, %s228
      %p239 = scmp.eq.s32.totalorder %s23, 0
      %p240 = por %p238, %p239
      %p241 = scmp.ne.s32.totalorder %s227, %s228
      %p242 = scmp.eq.s32.totalorder %s24, 1
      %p243 = por %p241, %p242
      %p245 = scmp.ne.s32.totalorder %s228, %s244
      %p246 = scmp.eq.s32.totalorder %s24, 0
      %p247 = por %p245, %p246
      %s248 = ssub.s32 %s25, %s37
      %s249 = ssub.s32 %s26, %s33
      %s250 = sor.u32 %s248, %s249
      %p251 = scmp.eq.s32.totalorder %s250, 0
      %s253 = sadd.s32 %s252, 1
      %s254 = scalar_select %p251, %s252, %s253
      %p257 = pneg %p251
      %p258 = scmp.eq.s32.totalorder %s18, 1
      %p259 = por %p257, %p258
      %p260 = scmp.ne.s32.totalorder %s252, %s255
      %p261 = scmp.eq.s32.totalorder %s18, 0
      %p262 = por %p260, %p261
      %p263 = scmp.ne.s32.totalorder %s252, %s255
      %p264 = scmp.eq.s32.totalorder %s23, 1
      %p265 = por %p263, %p264
      %p266 = scmp.ne.s32.totalorder %s255, %s256
      %p267 = scmp.eq.s32.totalorder %s23, 0
      %p268 = por %p266, %p267
      %p269 = scmp.ne.s32.totalorder %s255, %s256
      %p270 = scmp.eq.s32.totalorder %s24, 1
      %p271 = por %p269, %p270
      %p273 = scmp.ne.s32.totalorder %s256, %s272
      %p274 = scmp.eq.s32.totalorder %s24, 0
      %p275 = por %p273, %p274
      %p276 = scmp.le.s32.totalorder 1, %s18
      %p277 = scmp.lt.s32.totalorder %s18, 3
      %p278 = pnand %p276, %p277
      %p279 = pneg %p278
      // Predicated region
      $region9: #{bottleneck_forward.1} parent=5 // pred_check
        _
      $region10: #{bottleneck_forward.1} parent=5 // pred_check_branch
        %281 = sbr.rel (%p278) target = $region12
      $region11: #{bottleneck_forward.1} parent=5 // pred_region
        %s282 = ssub.s32 %s18, 1
        // Predicated region
        $region13: #{bottleneck_forward.1} parent=11 // pred_check
          %p283 = pneg %p107
        $region14: #{bottleneck_forward.1} parent=11 // pred_check_branch
          %285 = sbr.rel (%p283) target = $region16
        $region15: #{bottleneck_forward.1} parent=11 // pred_region
          _
        $region16: #{bottleneck_forward.1} parent=11 // pred_fallthru
          _
        // Predicated region
        $region17: #{bottleneck_forward.1} parent=11 // pred_check
          %p286 = pneg %p128
        $region18: #{bottleneck_forward.1} parent=11 // pred_check_branch
          %288 = sbr.rel (%p286) target = $region20
        $region19: #{bottleneck_forward.1} parent=11 // pred_region
          _
        $region20: #{bottleneck_forward.1} parent=11 // pred_fallthru
          _
        // Predicated region
        $region21: #{bottleneck_forward.1} parent=11 // pred_check
          %p289 = pneg %p149
        $region22: #{bottleneck_forward.1} parent=11 // pred_check_branch
          %291 = sbr.rel (%p289) target = $region24
        $region23: #{bottleneck_forward.1} parent=11 // pred_region
          %s293 = ssub.s32 3072, 3072
          %294 = vsyncadd [#allocation3], %s293
          %s295 = sshll.u32 [#allocation2], 4
          %s296 = int_to_ptr.vmem [resolvable:$true] %s295
          %301 = dma.hbm_to_vmem [thread:$0]  %s4, 3072, %s296, [#allocation3], 64, 64, 4
        $region24: #{bottleneck_forward.1} parent=11 // pred_fallthru
          _
        // Predicated region
        $region25: #{bottleneck_forward.1} parent=11 // pred_check
          %p302 = pneg %p170
        $region26: #{bottleneck_forward.1} parent=11 // pred_check_branch
          %304 = sbr.rel (%p302) target = $region28
        $region27: #{bottleneck_forward.1} parent=11 // pred_region
          _
        $region28: #{bottleneck_forward.1} parent=11 // pred_fallthru
          _
        // Predicated region
        $region29: #{bottleneck_forward.1} parent=11 // pred_check
          %p305 = pneg %p191
        $region30: #{bottleneck_forward.1} parent=11 // pred_check_branch
          %307 = sbr.rel (%p305) target = $region32
        $region31: #{bottleneck_forward.1} parent=11 // pred_region
          %s309 = ssub.s32 1024, 1024
          %310 = vsyncadd [#allocation5], %s309
          %s311 = sshll.u32 [#allocation4], 4
          %s312 = int_to_ptr.vmem [resolvable:$true] %s311
          %317 = dma.hbm_to_vmem [thread:$0]  %s6, 1024, %s312, [#allocation5], 64, 64, 4
        $region32: #{bottleneck_forward.1} parent=11 // pred_fallthru
          _
        // Predicated region
        $region33: #{bottleneck_forward.1} parent=11 // pred_check
          %p318 = pneg %p212
        $region34: #{bottleneck_forward.1} parent=11 // pred_check_branch
          %320 = sbr.rel (%p318) target = $region36
        $region35: #{bottleneck_forward.1} parent=11 // pred_region
          _
        $region36: #{bottleneck_forward.1} parent=11 // pred_fallthru
          _
      $region12: #{bottleneck_forward.1} parent=5 // pred_fallthru
        _
      %p321 = scmp.lt.s32.totalorder %s18, 2
      // Predicated region
      $region37: #{bottleneck_forward.1} parent=5 // pred_check
        %p322 = pneg %p321
      $region38: #{bottleneck_forward.1} parent=5 // pred_check_branch
        %324 = sbr.rel (%p322) target = $region40
      $region39: #{bottleneck_forward.1} parent=5 // pred_region
        // Predicated region
        $region41: #{bottleneck_forward.1} parent=39 // pred_check
          %p325 = pneg %p52
        $region42: #{bottleneck_forward.1} parent=39 // pred_check_branch
          %327 = sbr.rel (%p325) target = $region44
        $region43: #{bottleneck_forward.1} parent=39 // pred_region
          %s328 = smul.u32 2, %s26
          %p329 = scmp.lt.s32.totalorder %s25, 1
          %s330 = scalar_select %p329, %s25, 1
          %p331 = scmp.lt.s32.totalorder %s328, 1
          %s332 = scalar_select %p331, %s328, 1
          %s333 = smul.addr %s330, 2
          %s334 = sadd.s32 %s332, %s333
          %s335 = smul.addr %s334, 4
          %s336 = scalar_lea.vmem %s0, %s335
          %s337 = smul.u32 2, %s26
        $region44: #{bottleneck_forward.1} parent=39 // pred_fallthru
          _
        // Predicated region
        $region45: #{bottleneck_forward.1} parent=39 // pred_check
          %p338 = pneg %p80
        $region46: #{bottleneck_forward.1} parent=39 // pred_check_branch
          %340 = sbr.rel (%p338) target = $region48
        $region47: #{bottleneck_forward.1} parent=39 // pred_region
          %p341 = scmp.lt.s32.totalorder %s25, 1
          %s342 = scalar_select %p341, %s25, 1
          %p343 = scmp.lt.s32.totalorder %s26, 0
          %s344 = scalar_select %p343, %s26, 0
          %s345 = sadd.s32 %s344, %s342
          %s346 = scalar_lea.vmem %s1, %s345
        $region48: #{bottleneck_forward.1} parent=39 // pred_fallthru
          _
      $region40: #{bottleneck_forward.1} parent=5 // pred_fallthru
        _
      %p347 = scmp.le.s32.totalorder 1, %s18
      %p348 = scmp.lt.s32.totalorder %s18, 3
      %p349 = pnand %p347, %p348
      %p350 = pneg %p349
      // Predicated region
      $region49: #{bottleneck_forward.1} parent=5 // pred_check
        _
      $region50: #{bottleneck_forward.1} parent=5 // pred_check_branch
        %352 = sbr.rel (%p349) target = $region52
      $region51: #{bottleneck_forward.1} parent=5 // pred_region
        %s353 = ssub.s32 %s18, 1
        // Predicated region
        $region53: #{bottleneck_forward.1} parent=51 // pred_check
          %p354 = pneg %p149
        $region54: #{bottleneck_forward.1} parent=51 // pred_check_branch
          %356 = sbr.rel (%p354) target = $region56
        $region55: #{bottleneck_forward.1} parent=51 // pred_region
          %357 = dma.done [#allocation3], 3072
        $region56: #{bottleneck_forward.1} parent=51 // pred_fallthru
          _
        // Predicated region
        $region57: #{bottleneck_forward.1} parent=51 // pred_check
          %p358 = pneg %p191
        $region58: #{bottleneck_forward.1} parent=51 // pred_check_branch
          %360 = sbr.rel (%p358) target = $region60
        $region59: #{bottleneck_forward.1} parent=51 // pred_region
          %361 = dma.done [#allocation5], 1024
        $region60: #{bottleneck_forward.1} parent=51 // pred_fallthru
          _
        %s362 = smul.u32 2, %s28
        %p363 = scmp.lt.s32.totalorder %s27, 1
        %s364 = scalar_select %p363, %s27, 1
        %p365 = scmp.lt.s32.totalorder %s362, 1
        %s366 = scalar_select %p365, %s362, 1
        %s367 = smul.addr %s364, 2
        %s368 = sadd.s32 %s366, %s367
        %s369 = smul.addr %s368, 4
        %s370 = scalar_lea.vmem %s0, %s369
        %p371 = pneg %p58
        %p372 = pneg %p55
        %p373 = scmp.lt.s32.totalorder %s27, 1
        %s374 = scalar_select %p373, %s27, 1
        %p375 = scmp.lt.s32.totalorder %s28, 0
        %s376 = scalar_select %p375, %s28, 0
        %s377 = sadd.s32 %s376, %s374
        %s378 = scalar_lea.vmem %s1, %s377
        %p379 = pneg %p86
        %p380 = pneg %p83
        %p381 = pneg %p107
        %p382 = pneg %p104
        %p383 = pneg %p128
        %p384 = pneg %p125
        %p385 = pneg %p149
        %p386 = pneg %p146
        %p387 = pneg %p170
        %p388 = pneg %p167
        %p389 = pneg %p191
        %p390 = pneg %p188
        %p391 = pneg %p212
        %p392 = pneg %p209
        %p393 = pneg %p240
        %p394 = pneg %p237
        %s395 = smul.u32 2, %s28
        %p396 = scmp.lt.s32.totalorder %s27, 1
        %s397 = scalar_select %p396, %s27, 1
        %p398 = scmp.lt.s32.totalorder %s395, 1
        %s399 = scalar_select %p398, %s395, 1
        %s400 = smul.addr %s397, 2
        %s401 = sadd.s32 %s399, %s400
        %s402 = smul.addr %s401, 4
        %s403 = scalar_lea.vmem %s8, %s402
        %p404 = pneg %p268
        %p405 = pneg %p265
        %s406 = smul.u32 2, %s28
        %p407 = scmp.lt.s32.totalorder %s27, 1
        %s408 = scalar_select %p407, %s27, 1
        %p409 = scmp.lt.s32.totalorder %s406, 1
        %s410 = scalar_select %p409, %s406, 1
        %s411 = smul.addr %s408, 2
        %s412 = sadd.s32 %s410, %s411
        %s413 = smul.addr %s412, 4
        %s414 = scalar_lea.vmem %s9, %s413
        %s415 = smul.u32 2, %s28
        %p416 = scmp.lt.s32.totalorder %s27, 1
        %s417 = scalar_select %p416, %s27, 1
        %p418 = scmp.lt.s32.totalorder %s415, 1
        %s419 = scalar_select %p418, %s415, 1
        %s420 = smul.addr %s417, 2
        %s421 = sadd.s32 %s419, %s420
        %s422 = smul.addr %s421, 4
        %s423 = scalar_lea.vmem %s0, %s422
        %s424 = smul.u32 2, %s28
        %p425 = scmp.lt.s32.totalorder %s27, 1
        %s426 = scalar_select %p425, %s27, 1
        %p427 = scmp.lt.s32.totalorder %s28, 0
        %s428 = scalar_select %p427, %s28, 0
        %s429 = sadd.s32 %s428, %s426
        %s430 = scalar_lea.vmem %s1, %s429
        %s431 = smul.u32 2, %s28
        %p432 = scmp.lt.s32.totalorder %s27, 1
        %s433 = scalar_select %p432, %s27, 1
        %p434 = scmp.lt.s32.totalorder %s431, 1
        %s435 = scalar_select %p434, %s431, 1
        %s436 = smul.addr %s433, 2
        %s437 = sadd.s32 %s435, %s436
        %s438 = smul.addr %s437, 4
        %s439 = scalar_lea.vmem %s8, %s438
        %s440 = smul.u32 2, %s28
        %s441 = smul.u32 2, %s28
        %p442 = scmp.lt.s32.totalorder %s27, 1
        %s443 = scalar_select %p442, %s27, 1
        %p444 = scmp.lt.s32.totalorder %s441, 1
        %s445 = scalar_select %p444, %s441, 1
        %s446 = smul.addr %s443, 2
        %s447 = sadd.s32 %s445, %s446
        %s448 = smul.addr %s447, 4
        %s449 = scalar_lea.vmem %s9, %s448
        %s450 = smul.u32 2, %s28
        %v452 = vld [vmem:[%s423] sm:$0xf]
        %v453 = vld [vmem:[%s423 + $0x4] sm:$0xf]
        %s454 = smul.u32 %s28, 16
        %v455 = vld [vmem:[%s2] sm:$0xf]
        %v456 = vld [vmem:[%s2 + $0x4] sm:$0xf]
        %v457 = vld [vmem:[%s2 + $0x8] sm:$0xf]
        %v458 = vld [vmem:[%s2 + $0xc] sm:$0xf]
        %v459 = vld [vmem:[%s2 + $0x10] sm:$0xf]
        %v460 = vld [vmem:[%s2 + $0x14] sm:$0xf]
        %v461 = vld [vmem:[%s2 + $0x18] sm:$0xf]
        %v462 = vld [vmem:[%s2 + $0x1c] sm:$0xf]
        %v463 = vld [vmem:[%s2 + $0x20] sm:$0xf]
        %v464 = vld [vmem:[%s2 + $0x24] sm:$0xf]
        %v465 = vld [vmem:[%s2 + $0x28] sm:$0xf]
        %v466 = vld [vmem:[%s2 + $0x2c] sm:$0xf]
        %v467 = vld [vmem:[%s2 + $0x30] sm:$0xf]
        %v468 = vld [vmem:[%s2 + $0x34] sm:$0xf]
        %v469 = vld [vmem:[%s2 + $0x38] sm:$0xf]
        %v470 = vld [vmem:[%s2 + $0x3c] sm:$0xf]
        %v471 = vld [vmem:[%s3] sm:$0x1]
        %v473 = vlaneseq
        %v474 = vshrl.u32 %v473, 7
        %v475 = vsub.s32 0, %v474
        %v476 = vrot.slane %v471, %v475
        %v480 = vunpack.c.l.b16 %v452
        %v481 = vunpack.c.l.b16 %v453
        %v482 = vpack.c.b16 %v481, %v480
        %v500 = vunpack.c.l.b16 %v455
        %v501 = vunpack.c.l.b16 %v456
        %v502 = vunpack.c.l.b16 %v457
        %v503 = vunpack.c.l.b16 %v458
        %v504 = vunpack.c.l.b16 %v459
        %v505 = vunpack.c.l.b16 %v460
        %v506 = vunpack.c.l.b16 %v461
        %v507 = vunpack.c.l.b16 %v462
        %v508 = vunpack.c.l.b16 %v463
        %v509 = vunpack.c.l.b16 %v464
        %v510 = vunpack.c.l.b16 %v465
        %v511 = vunpack.c.l.b16 %v466
        %v512 = vunpack.c.l.b16 %v467
        %v513 = vunpack.c.l.b16 %v468
        %v514 = vunpack.c.l.b16 %v469
        %v515 = vunpack.c.l.b16 %v470
        %v516 = vpack.c.b16 %v501, %v500
        %v517 = vpack.c.b16 %v503, %v502
        %v518 = vpack.c.b16 %v505, %v504
        %v519 = vpack.c.b16 %v507, %v506
        %v520 = vpack.c.b16 %v509, %v508
        %v521 = vpack.c.b16 %v511, %v510
        %v522 = vpack.c.b16 %v513, %v512
        %v523 = vpack.c.b16 %v515, %v514
        %532 = vmatprep.subr.bf16.mxu0 0
        %533 = vmatpush1.bf16.msra.mxu0 %v516
        %534 = vmatprep.subr.bf16.mxu0 0
        %535 = vmatpush1.bf16.msra.mxu0 %v517
        %536 = vmatprep.subr.bf16.mxu0 0
        %537 = vmatpush1.bf16.msra.mxu0 %v518
        %538 = vmatprep.subr.bf16.mxu0 0
        %539 = vmatpush1.bf16.msra.mxu0 %v519
        %540 = vmatprep.subr.bf16.mxu0 0
        %541 = vmatpush1.bf16.msra.mxu0 %v520
        %542 = vmatprep.subr.bf16.mxu0 0
        %543 = vmatpush1.bf16.msra.mxu0 %v521
        %544 = vmatprep.subr.bf16.mxu0 0
        %545 = vmatpush1.bf16.msra.mxu0 %v522
        %546 = vmatprep.subr.bf16.mxu0 0
        %547 = vmatpush1.bf16.msra.mxu0 %v523
        %548 = vmatprep.subr.bf16.mxu0 0
        %549 = vmatpush1.bf16.msra.mxu0 0
        %550 = vmatprep.subr.bf16.mxu0 0
        %551 = vmatpush1.bf16.msra.mxu0 0
        %552 = vmatprep.subr.bf16.mxu0 0
        %553 = vmatpush1.bf16.msra.mxu0 0
        %554 = vmatprep.subr.bf16.mxu0 0
        %555 = vmatpush1.bf16.msra.mxu0 0
        %556 = vmatprep.subr.bf16.mxu0 0
        %557 = vmatpush1.bf16.msra.mxu0 0
        %558 = vmatprep.subr.bf16.mxu0 0
        %559 = vmatpush1.bf16.msra.mxu0 0
        %560 = vmatprep.subr.bf16.mxu0 0
        %561 = vmatpush1.bf16.msra.mxu0 0
        %562 = vmatprep.subr.bf16.mxu0 0
        %563 = vmatpush1.bf16.msra.mxu0 0
        %564 = vmatprep.mubr.bf16.mxu0 0
        %565 = vmatmul.mubr.bf16.gmra.mrb[0].mxu0 %v482
        %v566 = vpop.f32.mrb[0].mxu0
        %v567 = vadd.f32 %v476, %v566
        %v568 = vpop.f32.mrb[0].mxu0
        %v569 = vpop.f32.mrb[0].mxu0
        %v570 = vadd.f32 %v476, %v569
        %v571 = vpop.f32.mrb[0].mxu0
        %572 = vdwg.mxu0
        %v573 = vmax.f32 %v567, 0.0
        %v574 = vmax.f32 %v570, 0.0
        %v575 = vlaneseq
        %v576 = vshrl.u32 %v575, 7
        %v577 = vadd.s32 %v576, 8
        %v578 = vstv %s454
        %v579 = vadd.s32 %v576, %v578
        %v580 = vadd.s32 %v577, %v578
        %vm581 = vcmp.lt.s32.totalorder %v579, 16
        %vm582 = vcmp.lt.s32.totalorder %v580, 16
        %v583 = vsel %vm581, %v573, 0.0
        %v584 = vsel %vm582, %v574, 0.0
        %v585 = vpack.c.bf16 %v584, %v583
        %v586 = vld [vmem:[%s430] sm:$0x1]
        %587 = vmatprep.subr.bf16.mxu0 0
        %588 = vmatpush1.bf16.msra.mxu0 %v516
        %589 = vmatprep.subr.bf16.mxu0 0
        %590 = vmatpush1.bf16.msra.mxu0 %v517
        %591 = vmatprep.subr.bf16.mxu0 0
        %592 = vmatpush1.bf16.msra.mxu0 %v518
        %593 = vmatprep.subr.bf16.mxu0 0
        %594 = vmatpush1.bf16.msra.mxu0 %v519
        %595 = vmatprep.subr.bf16.mxu0 0
        %596 = vmatpush1.bf16.msra.mxu0 %v520
        %597 = vmatprep.subr.bf16.mxu0 0
        %598 = vmatpush1.bf16.msra.mxu0 %v521
        %599 = vmatprep.subr.bf16.mxu0 0
        %600 = vmatpush1.bf16.msra.mxu0 %v522
        %601 = vmatprep.subr.bf16.mxu0 0
        %602 = vmatpush1.bf16.msra.mxu0 %v523
        %603 = vmatprep.subr.bf16.mxu0 0
        %604 = vmatpush1.bf16.msra.mxu0 0
        %605 = vmatprep.subr.bf16.mxu0 0
        %606 = vmatpush1.bf16.msra.mxu0 0
        %607 = vmatprep.subr.bf16.mxu0 0
        %608 = vmatpush1.bf16.msra.mxu0 0
        %609 = vmatprep.subr.bf16.mxu0 0
        %610 = vmatpush1.bf16.msra.mxu0 0
        %611 = vmatprep.subr.bf16.mxu0 0
        %612 = vmatpush1.bf16.msra.mxu0 0
        %613 = vmatprep.subr.bf16.mxu0 0
        %614 = vmatpush1.bf16.msra.mxu0 0
        %615 = vmatprep.subr.bf16.mxu0 0
        %616 = vmatpush1.bf16.msra.mxu0 0
        %617 = vmatprep.subr.bf16.mxu0 0
        %618 = vmatpush1.bf16.msra.mxu0 0
        %619 = vmatprep.mubr.bf16.mxu0 0
        %620 = vmatmul.mubr.bf16.gmra.mrb[0].mxu0 %v586
        %v621 = vpop.f32.mrb[0].mxu0
        %v622 = vadd.f32 %v476, %v621
        %v623 = vpop.f32.mrb[0].mxu0
        %v624 = vpop.f32.mrb[0].mxu0
        %v625 = vpop.f32.mrb[0].mxu0
        %626 = vdwg.mxu0
        %v627 = vmax.f32 %v622, 0.0
        %p628 = scmp.gt.s32.totalorder %s454, 0
        %s629 = scalar_select %p628, 1, 0
        %v630 = vstv %s629
        %vm631 = vcmp.eq.s32.totalorder %v630, 1
        %v632 = vsel %vm631, %v627, 0.0
        %v633 = vpack.c.bf16 %v632, %v632
        %s634 = sadd.s32 %s454, 16
        %p635 = scmp.lt.s32.totalorder %s634, 16
        %s636 = scalar_select %p635, 1, 0
        %v637 = vstv %s636
        %vm638 = vcmp.eq.s32.totalorder %v637, 1
        %v639 = vsel %vm638, %v627, 0.0
        %v640 = vpack.c.bf16 %v639, %v639
        %v642 = vshrl.u32 %v585, 16
        %v644 = vrot.slane %v642, 7
        %v645 = vshll.u32 %v585, 16
        %v647 = vor.u32 %v644, %v645
        %vm649 = vcmask 1040384
        %vm650 = vsmask.f32 256
        %vm651 = vmand %vm649, %vm650
        %v652 = vsel %vm651, %v633, %v647
        %v653 = vrot.slane %v645, 1
        %v654 = vor.u32 %v642, %v653
        %v657 = vrot.slane %v640, 1
        %vm659 = vcmask 1047552
        %vm660 = vsmask.f32 7424
        %vm661 = vmand %vm659, %vm660
        %v662 = vsel %vm661, %v654, %v657
        %v663 = vld [vmem:[#allocation2] sm:$0xf]
        %v664 = vld [vmem:[#allocation2 + $0x4] sm:$0xf]
        %v665 = vld [vmem:[#allocation2 + $0x8] sm:$0xf]
        %v666 = vld [vmem:[#allocation2 + $0xc] sm:$0xf]
        %v667 = vld [vmem:[#allocation2 + $0x10] sm:$0xf]
        %v668 = vld [vmem:[#allocation2 + $0x14] sm:$0xf]
        %v669 = vld [vmem:[#allocation2 + $0x18] sm:$0xf]
        %v670 = vld [vmem:[#allocation2 + $0x1c] sm:$0xf]
        %v671 = vld [vmem:[#allocation2 + $0x20] sm:$0xf]
        %v672 = vld [vmem:[#allocation2 + $0x24] sm:$0xf]
        %v673 = vld [vmem:[#allocation2 + $0x28] sm:$0xf]
        %v674 = vld [vmem:[#allocation2 + $0x2c] sm:$0xf]
        %v675 = vld [vmem:[#allocation2 + $0x30] sm:$0xf]
        %v676 = vld [vmem:[#allocation2 + $0x34] sm:$0xf]
        %v677 = vld [vmem:[#allocation2 + $0x38] sm:$0xf]
        %v678 = vld [vmem:[#allocation2 + $0x3c] sm:$0xf]
        %v679 = vld [vmem:[#allocation2 + $0x40] sm:$0xf]
        %v680 = vld [vmem:[#allocation2 + $0x44] sm:$0xf]
        %v681 = vld [vmem:[#allocation2 + $0x48] sm:$0xf]
        %v682 = vld [vmem:[#allocation2 + $0x4c] sm:$0xf]
        %v683 = vld [vmem:[#allocation2 + $0x50] sm:$0xf]
        %v684 = vld [vmem:[#allocation2 + $0x54] sm:$0xf]
        %v685 = vld [vmem:[#allocation2 + $0x58] sm:$0xf]
        %v686 = vld [vmem:[#allocation2 + $0x5c] sm:$0xf]
        %v687 = vld [vmem:[#allocation2 + $0x60] sm:$0xf]
        %v688 = vld [vmem:[#allocation2 + $0x64] sm:$0xf]
        %v689 = vld [vmem:[#allocation2 + $0x68] sm:$0xf]
        %v690 = vld [vmem:[#allocation2 + $0x6c] sm:$0xf]
        %v691 = vld [vmem:[#allocation2 + $0x70] sm:$0xf]
        %v692 = vld [vmem:[#allocation2 + $0x74] sm:$0xf]
        %v693 = vld [vmem:[#allocation2 + $0x78] sm:$0xf]
        %v694 = vld [vmem:[#allocation2 + $0x7c] sm:$0xf]
        %v695 = vld [vmem:[#allocation2 + $0x80] sm:$0xf]
        %v696 = vld [vmem:[#allocation2 + $0x84] sm:$0xf]
        %v697 = vld [vmem:[#allocation2 + $0x88] sm:$0xf]
        %v698 = vld [vmem:[#allocation2 + $0x8c] sm:$0xf]
        %v699 = vld [vmem:[#allocation2 + $0x90] sm:$0xf]
        %v700 = vld [vmem:[#allocation2 + $0x94] sm:$0xf]
        %v701 = vld [vmem:[#allocation2 + $0x98] sm:$0xf]
        %v702 = vld [vmem:[#allocation2 + $0x9c] sm:$0xf]
        %v703 = vld [vmem:[#allocation2 + $0xa0] sm:$0xf]
        %v704 = vld [vmem:[#allocation2 + $0xa4] sm:$0xf]
        %v705 = vld [vmem:[#allocation2 + $0xa8] sm:$0xf]
        %v706 = vld [vmem:[#allocation2 + $0xac] sm:$0xf]
        %v707 = vld [vmem:[#allocation2 + $0xb0] sm:$0xf]
        %v708 = vld [vmem:[#allocation2 + $0xb4] sm:$0xf]
        %v709 = vld [vmem:[#allocation2 + $0xb8] sm:$0xf]
        %v710 = vld [vmem:[#allocation2 + $0xbc] sm:$0xf]
        %v711 = vld [vmem:[%s5] sm:$0x1]
        %v713 = vlaneseq
        %v714 = vshrl.u32 %v713, 7
        %v715 = vsub.s32 0, %v714
        %v716 = vrot.slane %v711, %v715
        %v766 = vunpack.c.l.b16 %v663
        %v767 = vunpack.c.l.b16 %v664
        %v768 = vunpack.c.l.b16 %v665
        %v769 = vunpack.c.l.b16 %v666
        %v770 = vunpack.c.l.b16 %v667
        %v771 = vunpack.c.l.b16 %v668
        %v772 = vunpack.c.l.b16 %v669
        %v773 = vunpack.c.l.b16 %v670
        %v774 = vunpack.c.l.b16 %v671
        %v775 = vunpack.c.l.b16 %v672
        %v776 = vunpack.c.l.b16 %v673
        %v777 = vunpack.c.l.b16 %v674
        %v778 = vunpack.c.l.b16 %v675
        %v779 = vunpack.c.l.b16 %v676
        %v780 = vunpack.c.l.b16 %v677
        %v781 = vunpack.c.l.b16 %v678
        %v782 = vunpack.c.l.b16 %v679
        %v783 = vunpack.c.l.b16 %v680
        %v784 = vunpack.c.l.b16 %v681
        %v785 = vunpack.c.l.b16 %v682
        %v786 = vunpack.c.l.b16 %v683
        %v787 = vunpack.c.l.b16 %v684
        %v788 = vunpack.c.l.b16 %v685
        %v789 = vunpack.c.l.b16 %v686
        %v790 = vunpack.c.l.b16 %v687
        %v791 = vunpack.c.l.b16 %v688
        %v792 = vunpack.c.l.b16 %v689
        %v793 = vunpack.c.l.b16 %v690
        %v794 = vunpack.c.l.b16 %v691
        %v795 = vunpack.c.l.b16 %v692
        %v796 = vunpack.c.l.b16 %v693
        %v797 = vunpack.c.l.b16 %v694
        %v798 = vunpack.c.l.b16 %v695
        %v799 = vunpack.c.l.b16 %v696
        %v800 = vunpack.c.l.b16 %v697
        %v801 = vunpack.c.l.b16 %v698
        %v802 = vunpack.c.l.b16 %v699
        %v803 = vunpack.c.l.b16 %v700
        %v804 = vunpack.c.l.b16 %v701
        %v805 = vunpack.c.l.b16 %v702
        %v806 = vunpack.c.l.b16 %v703
        %v807 = vunpack.c.l.b16 %v704
        %v808 = vunpack.c.l.b16 %v705
        %v809 = vunpack.c.l.b16 %v706
        %v810 = vunpack.c.l.b16 %v707
        %v811 = vunpack.c.l.b16 %v708
        %v812 = vunpack.c.l.b16 %v709
        %v813 = vunpack.c.l.b16 %v710
        %v814 = vpack.c.b16 %v767, %v766
        %v815 = vpack.c.b16 %v769, %v768
        %v816 = vpack.c.b16 %v771, %v770
        %v817 = vpack.c.b16 %v773, %v772
        %v818 = vpack.c.b16 %v775, %v774
        %v819 = vpack.c.b16 %v777, %v776
        %v820 = vpack.c.b16 %v779, %v778
        %v821 = vpack.c.b16 %v781, %v780
        %v822 = vpack.c.b16 %v783, %v782
        %v823 = vpack.c.b16 %v785, %v784
        %v824 = vpack.c.b16 %v787, %v786
        %v825 = vpack.c.b16 %v789, %v788
        %v826 = vpack.c.b16 %v791, %v790
        %v827 = vpack.c.b16 %v793, %v792
        %v828 = vpack.c.b16 %v795, %v794
        %v829 = vpack.c.b16 %v797, %v796
        %v830 = vpack.c.b16 %v799, %v798
        %v831 = vpack.c.b16 %v801, %v800
        %v832 = vpack.c.b16 %v803, %v802
        %v833 = vpack.c.b16 %v805, %v804
        %v834 = vpack.c.b16 %v807, %v806
        %v835 = vpack.c.b16 %v809, %v808
        %v836 = vpack.c.b16 %v811, %v810
        %v837 = vpack.c.b16 %v813, %v812
        %862 = vmatprep.subr.bf16.mxu0 0
        %863 = vmatpush1.bf16.msra.mxu0 %v814
        %864 = vmatprep.subr.bf16.mxu0 0
        %865 = vmatpush1.bf16.msra.mxu0 %v815
        %866 = vmatprep.subr.bf16.mxu0 0
        %867 = vmatpush1.bf16.msra.mxu0 %v816
        %868 = vmatprep.subr.bf16.mxu0 0
        %869 = vmatpush1.bf16.msra.mxu0 %v817
        %870 = vmatprep.subr.bf16.mxu0 0
        %871 = vmatpush1.bf16.msra.mxu0 %v818
        %872 = vmatprep.subr.bf16.mxu0 0
        %873 = vmatpush1.bf16.msra.mxu0 %v819
        %874 = vmatprep.subr.bf16.mxu0 0
        %875 = vmatpush1.bf16.msra.mxu0 %v820
        %876 = vmatprep.subr.bf16.mxu0 0
        %877 = vmatpush1.bf16.msra.mxu0 %v821
        %878 = vmatprep.subr.bf16.mxu0 0
        %879 = vmatpush1.bf16.msra.mxu0 %v822
        %880 = vmatprep.subr.bf16.mxu0 0
        %881 = vmatpush1.bf16.msra.mxu0 %v823
        %882 = vmatprep.subr.bf16.mxu0 0
        %883 = vmatpush1.bf16.msra.mxu0 %v824
        %884 = vmatprep.subr.bf16.mxu0 0
        %885 = vmatpush1.bf16.msra.mxu0 %v825
        %886 = vmatprep.subr.bf16.mxu0 0
        %887 = vmatpush1.bf16.msra.mxu0 %v826
        %888 = vmatprep.subr.bf16.mxu0 0
        %889 = vmatpush1.bf16.msra.mxu0 %v827
        %890 = vmatprep.subr.bf16.mxu0 0
        %891 = vmatpush1.bf16.msra.mxu0 %v828
        %892 = vmatprep.subr.bf16.mxu0 0
        %893 = vmatpush1.bf16.msra.mxu0 %v829
        %894 = vmatprep.mubr.bf16.mxu0 %v585
        %895 = vmatmul.mubr.bf16.gmra.mrb[0].mxu0 %v652
        %v896 = vpop.f32.mrb[0].mxu0
        %v897 = vadd.f32 %v716, %v896
        %v898 = vpop.f32.mrb[0].mxu0
        %v899 = vpop.f32.mrb[0].mxu0
        %v900 = vadd.f32 %v716, %v899
        %v901 = vpop.f32.mrb[0].mxu0
        %902 = vdwg.mxu0
        %903 = vmatprep.subr.bf16.mxu0 0
        %904 = vmatpush1.bf16.msra.mxu0 %v830
        %905 = vmatprep.subr.bf16.mxu0 0
        %906 = vmatpush1.bf16.msra.mxu0 %v831
        %907 = vmatprep.subr.bf16.mxu0 0
        %908 = vmatpush1.bf16.msra.mxu0 %v832
        %909 = vmatprep.subr.bf16.mxu0 0
        %910 = vmatpush1.bf16.msra.mxu0 %v833
        %911 = vmatprep.subr.bf16.mxu0 0
        %912 = vmatpush1.bf16.msra.mxu0 %v834
        %913 = vmatprep.subr.bf16.mxu0 0
        %914 = vmatpush1.bf16.msra.mxu0 %v835
        %915 = vmatprep.subr.bf16.mxu0 0
        %916 = vmatpush1.bf16.msra.mxu0 %v836
        %917 = vmatprep.subr.bf16.mxu0 0
        %918 = vmatpush1.bf16.msra.mxu0 %v837
        %919 = vmatprep.subr.bf16.mxu0 0
        %920 = vmatpush1.bf16.msra.mxu0 0
        %921 = vmatprep.subr.bf16.mxu0 0
        %922 = vmatpush1.bf16.msra.mxu0 0
        %923 = vmatprep.subr.bf16.mxu0 0
        %924 = vmatpush1.bf16.msra.mxu0 0
        %925 = vmatprep.subr.bf16.mxu0 0
        %926 = vmatpush1.bf16.msra.mxu0 0
        %927 = vmatprep.subr.bf16.mxu0 0
        %928 = vmatpush1.bf16.msra.mxu0 0
        %929 = vmatprep.subr.bf16.mxu0 0
        %930 = vmatpush1.bf16.msra.mxu0 0
        %931 = vmatprep.subr.bf16.mxu0 0
        %932 = vmatpush1.bf16.msra.mxu0 0
        %933 = vmatprep.subr.bf16.mxu0 0
        %934 = vmatpush1.bf16.msra.mxu0 0
        %935 = vmatprep.mubr.bf16.mxu0 0
        %936 = vmatmul.mubr.bf16.gmra.mrb[0].mxu0 %v662
        %v937 = vpop.f32.mrb[0].mxu0
        %v938 = vadd.f32 %v897, %v937
        %v939 = vpop.f32.mrb[0].mxu0
        %v940 = vpop.f32.mrb[0].mxu0
        %v941 = vadd.f32 %v900, %v940
        %v942 = vpop.f32.mrb[0].mxu0
        %943 = vdwg.mxu0
        %v944 = vmax.f32 %v938, 0.0
        %v945 = vmax.f32 %v941, 0.0
        %v946 = vpack.c.bf16 %v945, %v944
        %v948 = vunpack.c.l.b16 %v946
        %v949 = vunpack.c.h.b16 %v946
        %v950 = vpack.c.b16 %v948, %v948
        %v951 = vpack.c.b16 %v949, %v949
        %954 = vst [vmem:[%s449] sm:$0xf] %v950
        %955 = vst [vmem:[%s449 + $0x4] sm:$0xf] %v951
        %v956 = vld [vmem:[#allocation4] sm:$0xf]
        %v957 = vld [vmem:[#allocation4 + $0x4] sm:$0xf]
        %v958 = vld [vmem:[#allocation4 + $0x8] sm:$0xf]
        %v959 = vld [vmem:[#allocation4 + $0xc] sm:$0xf]
        %v960 = vld [vmem:[#allocation4 + $0x10] sm:$0xf]
        %v961 = vld [vmem:[#allocation4 + $0x14] sm:$0xf]
        %v962 = vld [vmem:[#allocation4 + $0x18] sm:$0xf]
        %v963 = vld [vmem:[#allocation4 + $0x1c] sm:$0xf]
        %v964 = vld [vmem:[#allocation4 + $0x20] sm:$0xf]
        %v965 = vld [vmem:[#allocation4 + $0x24] sm:$0xf]
        %v966 = vld [vmem:[#allocation4 + $0x28] sm:$0xf]
        %v967 = vld [vmem:[#allocation4 + $0x2c] sm:$0xf]
        %v968 = vld [vmem:[#allocation4 + $0x30] sm:$0xf]
        %v969 = vld [vmem:[#allocation4 + $0x34] sm:$0xf]
        %v970 = vld [vmem:[#allocation4 + $0x38] sm:$0xf]
        %v971 = vld [vmem:[#allocation4 + $0x3c] sm:$0xf]
        %v972 = vld [vmem:[%s7] sm:$0x1]
        %v974 = vlaneseq
        %v975 = vshrl.u32 %v974, 7
        %v976 = vsub.s32 0, %v975
        %v977 = vrot.slane %v972, %v976
        %v995 = vunpack.c.l.b16 %v956
        %v996 = vunpack.c.l.b16 %v957
        %v997 = vunpack.c.l.b16 %v958
        %v998 = vunpack.c.l.b16 %v959
        %v999 = vunpack.c.l.b16 %v960
        %v1000 = vunpack.c.l.b16 %v961
        %v1001 = vunpack.c.l.b16 %v962
        %v1002 = vunpack.c.l.b16 %v963
        %v1003 = vunpack.c.l.b16 %v964
        %v1004 = vunpack.c.l.b16 %v965
        %v1005 = vunpack.c.l.b16 %v966
        %v1006 = vunpack.c.l.b16 %v967
        %v1007 = vunpack.c.l.b16 %v968
        %v1008 = vunpack.c.l.b16 %v969
        %v1009 = vunpack.c.l.b16 %v970
        %v1010 = vunpack.c.l.b16 %v971
        %v1011 = vpack.c.b16 %v996, %v995
        %v1012 = vpack.c.b16 %v998, %v997
        %v1013 = vpack.c.b16 %v1000, %v999
        %v1014 = vpack.c.b16 %v1002, %v1001
        %v1015 = vpack.c.b16 %v1004, %v1003
        %v1016 = vpack.c.b16 %v1006, %v1005
        %v1017 = vpack.c.b16 %v1008, %v1007
        %v1018 = vpack.c.b16 %v1010, %v1009
        %1027 = vmatprep.subr.bf16.mxu0 0
        %1028 = vmatpush1.bf16.msra.mxu0 %v1011
        %1029 = vmatprep.subr.bf16.mxu0 0
        %1030 = vmatpush1.bf16.msra.mxu0 %v1012
        %1031 = vmatprep.subr.bf16.mxu0 0
        %1032 = vmatpush1.bf16.msra.mxu0 %v1013
        %1033 = vmatprep.subr.bf16.mxu0 0
        %1034 = vmatpush1.bf16.msra.mxu0 %v1014
        %1035 = vmatprep.subr.bf16.mxu0 0
        %1036 = vmatpush1.bf16.msra.mxu0 %v1015
        %1037 = vmatprep.subr.bf16.mxu0 0
        %1038 = vmatpush1.bf16.msra.mxu0 %v1016
        %1039 = vmatprep.subr.bf16.mxu0 0
        %1040 = vmatpush1.bf16.msra.mxu0 %v1017
        %1041 = vmatprep.subr.bf16.mxu0 0
        %1042 = vmatpush1.bf16.msra.mxu0 %v1018
        %1043 = vmatprep.subr.bf16.mxu0 0
        %1044 = vmatpush1.bf16.msra.mxu0 0
        %1045 = vmatprep.subr.bf16.mxu0 0
        %1046 = vmatpush1.bf16.msra.mxu0 0
        %1047 = vmatprep.subr.bf16.mxu0 0
        %1048 = vmatpush1.bf16.msra.mxu0 0
        %1049 = vmatprep.subr.bf16.mxu0 0
        %1050 = vmatpush1.bf16.msra.mxu0 0
        %1051 = vmatprep.subr.bf16.mxu0 0
        %1052 = vmatpush1.bf16.msra.mxu0 0
        %1053 = vmatprep.subr.bf16.mxu0 0
        %1054 = vmatpush1.bf16.msra.mxu0 0
        %1055 = vmatprep.subr.bf16.mxu0 0
        %1056 = vmatpush1.bf16.msra.mxu0 0
        %1057 = vmatprep.subr.bf16.mxu0 0
        %1058 = vmatpush1.bf16.msra.mxu0 0
        %1059 = vmatprep.mubr.bf16.mxu0 0
        %1060 = vmatmul.mubr.bf16.gmra.mrb[0].mxu0 %v946
        %v1061 = vpop.f32.mrb[0].mxu0
        %v1062 = vadd.f32 %v977, %v1061
        %v1063 = vpop.f32.mrb[0].mxu0
        %v1064 = vpop.f32.mrb[0].mxu0
        %v1065 = vadd.f32 %v977, %v1064
        %v1066 = vpop.f32.mrb[0].mxu0
        %1067 = vdwg.mxu0
        %v1068 = vmax.f32 %v1062, 0.0
        %v1069 = vmax.f32 %v1065, 0.0
        %v1070 = vunpack.c.l.bf16 %v452
        %v1071 = vunpack.c.l.bf16 %v453
        %v1072 = vadd.f32 %v1068, %v1070
        %v1073 = vadd.f32 %v1069, %v1071
        %v1074 = vpack.c.bf16 %v1073, %v1072
        %v1076 = vunpack.c.l.b16 %v1074
        %v1077 = vunpack.c.h.b16 %v1074
        %v1078 = vpack.c.b16 %v1076, %v1076
        %v1079 = vpack.c.b16 %v1077, %v1077
        %1082 = vst [vmem:[%s439] sm:$0xf] %v1078
        %1083 = vst [vmem:[%s439 + $0x4] sm:$0xf] %v1079
        %s1084 = smul.u32 2, %s28
        %p1085 = scmp.lt.s32.totalorder %s27, 1
        %s1086 = scalar_select %p1085, %s27, 1
        %p1087 = scmp.lt.s32.totalorder %s1084, 1
        %s1088 = scalar_select %p1087, %s1084, 1
        %s1089 = smul.addr %s1086, 2
        %s1090 = sadd.s32 %s1088, %s1089
        %s1091 = smul.addr %s1090, 4
        %s1092 = scalar_lea.vmem %s8, %s1091
        %s1093 = smul.u32 2, %s28
        %p1094 = scmp.lt.s32.totalorder %s27, 1
        %s1095 = scalar_select %p1094, %s27, 1
        %p1096 = scmp.lt.s32.totalorder %s1093, 1
        %s1097 = scalar_select %p1096, %s1093, 1
        %s1098 = smul.addr %s1095, 2
        %s1099 = sadd.s32 %s1097, %s1098
        %s1100 = smul.addr %s1099, 4
        %s1101 = scalar_lea.vmem %s9, %s1100
        // Predicated region
        $region61: #{bottleneck_forward.1} parent=51 // pred_check
          %p1102 = pneg %p237
        $region62: #{bottleneck_forward.1} parent=51 // pred_check_branch
          %1104 = sbr.rel (%p1102) target = $region64
        $region63: #{bottleneck_forward.1} parent=51 // pred_region
          %s1105 = smul.u32 2, %s28
        $region64: #{bottleneck_forward.1} parent=51 // pred_fallthru
          _
        // Predicated region
        $region65: #{bottleneck_forward.1} parent=51 // pred_check
          %p1106 = pneg %p265
        $region66: #{bottleneck_forward.1} parent=51 // pred_check_branch
          %1108 = sbr.rel (%p1106) target = $region68
        $region67: #{bottleneck_forward.1} parent=51 // pred_region
          %s1109 = smul.u32 2, %s28
        $region68: #{bottleneck_forward.1} parent=51 // pred_fallthru
          _
      $region52: #{bottleneck_forward.1} parent=5 // pred_fallthru
        _
      %p1110 = scmp.le.s32.totalorder 2, %s18
      // Predicated region
      $region69: #{bottleneck_forward.1} parent=5 // pred_check
        %p1111 = pneg %p1110
      $region70: #{bottleneck_forward.1} parent=5 // pred_check_branch
        %1113 = sbr.rel (%p1111) target = $region72
      $region71: #{bottleneck_forward.1} parent=5 // pred_region
        %s1114 = ssub.s32 %s18, 2
        // Predicated region
        $region73: #{bottleneck_forward.1} parent=71 // pred_check
          %p1115 = pneg %p243
        $region74: #{bottleneck_forward.1} parent=71 // pred_check_branch
          %1117 = sbr.rel (%p1115) target = $region76
        $region75: #{bottleneck_forward.1} parent=71 // pred_region
          %s1118 = smul.u32 2, %s30
          %p1119 = scmp.lt.s32.totalorder %s29, 1
          %s1120 = scalar_select %p1119, %s29, 1
          %p1121 = scmp.lt.s32.totalorder %s1118, 1
          %s1122 = scalar_select %p1121, %s1118, 1
          %s1123 = smul.addr %s1120, 2
          %s1124 = sadd.s32 %s1122, %s1123
          %s1125 = smul.addr %s1124, 4
          %s1126 = scalar_lea.vmem %s8, %s1125
        $region76: #{bottleneck_forward.1} parent=71 // pred_fallthru
          _
        // Predicated region
        $region77: #{bottleneck_forward.1} parent=71 // pred_check
          %p1127 = pneg %p271
        $region78: #{bottleneck_forward.1} parent=71 // pred_check_branch
          %1129 = sbr.rel (%p1127) target = $region80
        $region79: #{bottleneck_forward.1} parent=71 // pred_region
          %s1130 = smul.u32 2, %s30
          %p1131 = scmp.lt.s32.totalorder %s29, 1
          %s1132 = scalar_select %p1131, %s29, 1
          %p1133 = scmp.lt.s32.totalorder %s1130, 1
          %s1134 = scalar_select %p1133, %s1130, 1
          %s1135 = smul.addr %s1132, 2
          %s1136 = sadd.s32 %s1134, %s1135
          %s1137 = smul.addr %s1136, 4
          %s1138 = scalar_lea.vmem %s9, %s1137
        $region80: #{bottleneck_forward.1} parent=71 // pred_fallthru
          _
      $region72: #{bottleneck_forward.1} parent=5 // pred_fallthru
        _
    $region6: #{bottleneck_forward.1} parent=1 // loop_footer
      %s22 = sadd.s32 1, %s18
    $region7: #{bottleneck_forward.1} parent=1 // loop_footer_branch
      %17 = sbr.rel target = $region3
    $region8: #{bottleneck_forward.1} parent=1 // loop_exit
      _
    %1139 = vsyncpa [#allocation3], 1
    %s1140 = scalar_lea.sflag [#allocation3], 1
    %1141 = vsyncpa %s1140, 1
    %1142 = vsyncpa [#allocation5], 1

</llo_original>
